<compile_context>
chip_gen: v7x
topology: tpu7x:2x2x1
jax: 0.10.0
libtpu: 0.0.40
codegen_flags: <defaults>
</compile_context>

<pallas_src>
import math

import jax
import jax.numpy as jnp
from jax.experimental import pallas as pl
from jax.experimental.pallas import tpu as pltpu


def _round_up(x, m):
    return ((x + m - 1) // m) * m


# Conservative per-kernel VMEM tile budget: fits v7x (64 MiB physical) and the
# default scoped limits on v5e/v6e without forcing the compiler to degrade tiling.
_VMEM_TILE_BUDGET = 32 * 1024 * 1024


def _pick_tm(B, Np):
    """Batch tile rows: as large as the VMEM budget allows, capped at 1024."""
    resident = Np * Np * 4 + 4 * Np * 4                 # W^T + eps + alpha (single-buffered)
    per_row = 2 * 3 * Np * 4                            # double-buffered x, mu, out (f32)
    avail = max(_VMEM_TILE_BUDGET - resident, per_row * 8)
    tm_cap = max(8, (avail // per_row) // 8 * 8)
    tm_cap = min(tm_cap, 1024)
    if B <= 16:
        return min(_round_up(B, 8), tm_cap)
    # >= 2 batch tiles so a 2-TensorCore part (v7x) can split the batch axis.
    return min(_round_up(pl.cdiv(B, 2), 8), tm_cap)


def _cellbox_kernel(x_ref, wt_ref, mu_ref, eps_ref, alpha_ref, o_ref):
    x = x_ref[...]                                        # (TM, Np) f32
    # nn.Linear semantics: y = x @ W^T.  W^T was materialized once in the wrapper,
    # so this is a pure NN MXU matmul (no in-kernel transpose).
    y = jnp.dot(x, wt_ref[...], preferred_element_type=jnp.float32)
    y = jnp.tanh(y + mu_ref[...])                         # + mu, tanh (EUP)
    o_ref[...] = (eps_ref[...] * y - alpha_ref[...] * x).astype(o_ref.dtype)


def prepare_cellbox_params(w, epsilon, alpha):
    """One-time parameter prep (call once, reuse across forward calls / ODE steps).

    w:       (N, N) masked weight (StructInfoLayer.load_mask already applied)
    epsilon: (N,)
    alpha:   (N,)
    Returns (wT_padded (Np, Np), eps_padded (1, Np), alpha_padded (1, Np), N).
    """
    N = w.shape[0]
    assert w.shape == (N, N) and epsilon.shape == (N,) and alpha.shape == (N,)
    Np = _round_up(N, 128)
    wt = jnp.zeros((Np, Np), w.dtype).at[:N, :N].set(w.T)      # pre-transpose once
    epsp = jnp.zeros((1, Np), epsilon.dtype).at[0, :N].set(epsilon)
    alphap = jnp.zeros((1, Np), alpha.dtype).at[0, :N].set(alpha)
    return wt, epsp, alphap, N


def cellbox_forward(x, mu, wt_p, eps_p, alpha_p, n_x):
    """x: (B, N), mu: (B, N); wt_p/eps_p/alpha_p from prepare_cellbox_params."""
    B, N = x.shape
    assert N == n_x and mu.shape == (B, N)
    assert x.dtype == mu.dtype == wt_p.dtype, "unify dtypes before calling the kernel"
    Np = wt_p.shape[0]

    TM = _pick_tm(B, Np)
    Bp = _round_up(B, TM)

    # Pad activations only when required (padding is exact: padded eps/alpha are 0,
    # so padded output rows/columns are exactly 0 before the slice).
    needs_pad = (Np != N) or (Bp != B)
    if needs_pad:
        xp = jnp.zeros((Bp, Np), x.dtype).at[:B, :N].set(x)
        mup = jnp.zeros((Bp, Np), mu.dtype).at[:B, :N].set(mu)
    else:
        xp, mup = x, mu

    grid = (Bp // TM,)
    row_spec = pl.BlockSpec((TM, Np), lambda i: (i, 0))          # x, mu, out: batch-tiled
    w_spec = pl.BlockSpec((Np, Np), lambda i: (0, 0),            # W^T resident, single buf
                          pipeline_mode=pl.Buffered(1))
    vec_spec = pl.BlockSpec((1, Np), lambda i: (0, 0),           # eps / alpha resident
                            pipeline_mode=pl.Buffered(1))

    itemsize = jnp.dtype(x.dtype).itemsize
    footprint = (2 * 3 * TM * Np + Np * Np + 2 * 2 * Np) * 4
    vmem_limit = int(min(48 * 1024 * 1024,
                         max(16 * 1024 * 1024, footprint * 2 + (2 << 20))))
    cost = pl.CostEstimate(
        flops=2 * Bp * Np * Np,
        transcendentals=Bp * Np,
        bytes_accessed=(3 * Bp * Np + Np * Np + 2 * Np) * itemsize,
    )

    out_p = pl.pallas_call(
        _cellbox_kernel,
        out_shape=jax.ShapeDtypeStruct((Bp, Np), x.dtype),
        grid_spec=pl.GridSpec(
            grid=grid,
            in_specs=[row_spec, w_spec, row_spec, vec_spec, vec_spec],
            out_specs=row_spec,
        ),
        compiler_params=pltpu.CompilerParams(
            dimension_semantics=("parallel",),
            vmem_limit_bytes=vmem_limit,
        ),
        cost_estimate=cost,
    )(xp, wt_p, mup, eps_p, alpha_p)

    if needs_pad:
        return out_p[:B, :N]
    return out_p


def reference_forward(x, w, mu, epsilon, alpha):
    y = x @ w.T + mu
    y = jnp.tanh(y)
    y = epsilon[None, :] * y
    return y - alpha[None, :] * x


if __name__ == "__main__":
    key = jax.random.PRNGKey(0)
    B, N = 8, 32  # batch, n_x

    k_x, k_w, k_mu, k_mask = jax.random.split(key, 4)
    x = jax.random.normal(k_x, (B, N), dtype=jnp.float32)
    mu = jax.random.normal(k_mu, (B, N), dtype=jnp.float32)

    # StructInfoLayer weight + structural mask (deterministic synthetic init).
    w_raw = jax.random.normal(k_w, (N, N), dtype=jnp.float32) * 0.1
    mask = (jax.random.uniform(k_mask, (N, N)) > 0.3).astype(jnp.float32)
    w = w_raw * mask  # load_mask(): zero masked connections (glue, outside kernel)

    # epsilon = alpha = softplus(ones(n_x))
    sp1 = jnp.float32(math.log(1.0 + math.e))
    epsilon = jnp.full((N,), sp1, dtype=jnp.float32)
    alpha = jnp.full((N,), sp1, dtype=jnp.float32)

    # One-time parameter prep (hoisted out of the per-call forward).
    wt_p, eps_p, alpha_p, n_x = prepare_cellbox_params(w, epsilon, alpha)

    out = cellbox_forward(x, mu, wt_p, eps_p, alpha_p, n_x)
    out = jax.block_until_ready(out)

    ref = reference_forward(x, w, mu, epsilon, alpha)
    assert out.shape == (B, N)
    assert jnp.allclose(out, ref, atol=1e-5, rtol=1e-5), "mismatch vs reference"

    print("KERNEL_OK")
</pallas_src>

<mosaic_0001>
module attributes {stable_mosaic.version = 11 : i64} {
  func.func @_cellbox_kernel(%arg0: i32, %arg1: memref<8x128xf32, #tpu.memory_space<vmem>>, %arg2: memref<128x128xf32, #tpu.memory_space<vmem>>, %arg3: memref<8x128xf32, #tpu.memory_space<vmem>>, %arg4: memref<1x128xf32, #tpu.memory_space<vmem>>, %arg5: memref<1x128xf32, #tpu.memory_space<vmem>>, %arg6: memref<8x128xf32, #tpu.memory_space<vmem>>) attributes {dimension_semantics = [#tpu.dimension_semantics<parallel>], iteration_bounds = array<i64: 1>, scalar_prefetch = 0 : i64, scratch_operands = 0 : i64, tpu.core_type = #tpu.core_type<tc>, window_params = [{transform_indices = @transform_0, window_bounds = array<i64: 8, 128>}, {pipeline_mode = #tpu.pipeline_mode<synchronous>, transform_indices = @transform_1, window_bounds = array<i64: 128, 128>}, {transform_indices = @transform_2, window_bounds = array<i64: 8, 128>}, {pipeline_mode = #tpu.pipeline_mode<synchronous>, transform_indices = @transform_3, window_bounds = array<i64: 1, 128>}, {pipeline_mode = #tpu.pipeline_mode<synchronous>, transform_indices = @transform_4, window_bounds = array<i64: 1, 128>}, {transform_indices = @transform_5, window_bounds = array<i64: 8, 128>}]} {
    %c0 = arith.constant 0 : index
    %c0_0 = arith.constant 0 : index
    %0 = vector.load %arg1[%c0, %c0_0] : memref<8x128xf32, #tpu.memory_space<vmem>>, vector<8x128xf32>
    %c0_1 = arith.constant 0 : index
    %c0_2 = arith.constant 0 : index
    %1 = vector.load %arg2[%c0_1, %c0_2] : memref<128x128xf32, #tpu.memory_space<vmem>>, vector<128x128xf32>
    %cst = arith.constant dense<0.000000e+00> : vector<8x128xf32>
    %2 = tpu.matmul %0, %1, %cst {dimension_numbers = #tpu.dot_dimension_numbers<[1], [0], [0], [1], [0, 0, 1, 1], [], []>} : vector<8x128xf32>, vector<128x128xf32>, vector<8x128xf32> -> vector<8x128xf32>
    %c0_3 = arith.constant 0 : index
    %c0_4 = arith.constant 0 : index
    %3 = vector.load %arg3[%c0_3, %c0_4] : memref<8x128xf32, #tpu.memory_space<vmem>>, vector<8x128xf32>
    %4 = arith.addf %2, %3 : vector<8x128xf32>
    %5 = math.tanh %4 : vector<8x128xf32>
    %c0_5 = arith.constant 0 : index
    %c0_6 = arith.constant 0 : index
    %6 = vector.load %arg4[%c0_5, %c0_6] : memref<1x128xf32, #tpu.memory_space<vmem>>, vector<1x128xf32>
    %7 = vector.broadcast %6 : vector<1x128xf32> to vector<8x128xf32>
    %8 = arith.mulf %7, %5 : vector<8x128xf32>
    %c0_7 = arith.constant 0 : index
    %c0_8 = arith.constant 0 : index
    %9 = vector.load %arg5[%c0_7, %c0_8] : memref<1x128xf32, #tpu.memory_space<vmem>>, vector<1x128xf32>
    %10 = vector.broadcast %9 : vector<1x128xf32> to vector<8x128xf32>
    %11 = arith.mulf %10, %0 : vector<8x128xf32>
    %12 = arith.subf %8, %11 : vector<8x128xf32>
    %c0_9 = arith.constant 0 : index
    %c0_10 = arith.constant 0 : index
    %13 = vector.load %arg6[%c0_9, %c0_10] : memref<8x128xf32, #tpu.memory_space<vmem>>, vector<8x128xf32>
    tpu.vector_store %arg6[%c0_9, %c0_10], %12 {strides = array<i32>} : memref<8x128xf32, #tpu.memory_space<vmem>>, vector<8x128xf32>,
    return
  }
  func.func @transform_0(%arg0: i32) -> (i32, i32) {
    %c0_i32 = arith.constant 0 : i32
    %c0_i32_0 = arith.constant 0 : i32
    return %arg0, %c0_i32 : i32, i32
  }
  func.func @transform_1(%arg0: i32) -> (i32, i32) {
    %c0_i32 = arith.constant 0 : i32
    %c0_i32_0 = arith.constant 0 : i32
    %c0_i32_1 = arith.constant 0 : i32
    return %c0_i32, %c0_i32_0 : i32, i32
  }
  func.func @transform_2(%arg0: i32) -> (i32, i32) {
    %c0_i32 = arith.constant 0 : i32
    %c0_i32_0 = arith.constant 0 : i32
    return %arg0, %c0_i32 : i32, i32
  }
  func.func @transform_3(%arg0: i32) -> (i32, i32) {
    %c0_i32 = arith.constant 0 : i32
    %c0_i32_0 = arith.constant 0 : i32
    %c0_i32_1 = arith.constant 0 : i32
    return %c0_i32, %c0_i32_0 : i32, i32
  }
  func.func @transform_4(%arg0: i32) -> (i32, i32) {
    %c0_i32 = arith.constant 0 : i32
    %c0_i32_0 = arith.constant 0 : i32
    %c0_i32_1 = arith.constant 0 : i32
    return %c0_i32, %c0_i32_0 : i32, i32
  }
  func.func @transform_5(%arg0: i32) -> (i32, i32) {
    %c0_i32 = arith.constant 0 : i32
    %c0_i32_0 = arith.constant 0 : i32
    return %arg0, %c0_i32 : i32, i32
  }
}

</mosaic_0001>

<llo_original>
// kernel: tpu_custom_call.1
$region0: #{tpu_custom_call.1}
  #allocation0 [shape = 'u32[]', space=smem, size = 0x4, offset = 0x4, fixed_abs, tag = 'smem constant byte address 0x4 - core index']
  #allocation1 [shape = 'u32[144,128]{1,0:T(1,128)}', space=vmem, size = 0x12000, scoped, tag = 'internal scratch']
  %s0 = inlined_call_operand.hbm [shape: f32[8,128], index: 0, kind: input, shape index: {}]
  %s1 = inlined_call_operand.hbm [shape: f32[128,128], index: 1, kind: input, shape index: {}]
  %s2 = inlined_call_operand.hbm [shape: f32[8,128], index: 2, kind: input, shape index: {}]
  %s3 = inlined_call_operand.vmem [shape: f32[1,128], index: 3, kind: input, shape index: {}]
  %s4 = inlined_call_operand.vmem [shape: f32[1,128], index: 4, kind: input, shape index: {}]
  %s5 = inlined_call_operand.hbm [shape: f32[8,128], index: 5, kind: output, shape index: {}]
  %s6 = sld [smem:[#allocation0]]
  $region42: #{tpu_custom_call.1} parent=0
    _
  %s8 = ssub.s32 1, %s6
  %s9 = scalar_select 0, %s8, %s6
  $region1: #{tpu_custom_call.1} parent=0
    #allocation2 [shape = 'u8[4096]{0}', space=vmem, size = 0x1000, scoped, tag = 'input window, operand 0, single buffered']
    #allocation3 [shape = 's32[1]{0}', space=sflag, size = 0x4, scoped, tag = 'scoped memory for tpu_custom_call.1']
    #allocation4 [shape = 's32[1]{0}', space=sflag, size = 0x4, scoped, tag = 'scoped memory for tpu_custom_call.1']
    #allocation5 [shape = 'u8[65536]{0}', space=vmem, size = 0x10000, scoped, tag = 'input window, operand 1, single buffered']
    #allocation6 [shape = 's32[1]{0}', space=sflag, size = 0x4, scoped, tag = 'scoped memory for tpu_custom_call.1']
    #allocation7 [shape = 'u8[4096]{0}', space=vmem, size = 0x1000, scoped, tag = 'input window, operand 2, single buffered']
    #allocation8 [shape = 'u8[4096]{0}', space=vmem, size = 0x1000, scoped, tag = 'output window, operand 0, single buffered']
    %10 = vsyncpa [#allocation3], 0
    %11 = vsyncpa [#allocation6], 0
    %12 = vsyncpa [#allocation4], 0
    // Predicated region
    $region2: #{tpu_custom_call.1} parent=1 // pred_check
      _
    $region3: #{tpu_custom_call.1} parent=1 // pred_check_branch
      %14 = sbr.rel (0) target = $region5
    $region4: #{tpu_custom_call.1} parent=1 // pred_region
      %s16 = ssub.s32 128, 128
      %17 = vsyncadd [#allocation3], %s16
      %s19 = sshll.u32 [#allocation2], 4
      %s20 = int_to_ptr.vmem [resolvable:$true] %s19
      %22 = dma.hbm_to_vmem [thread:$0]  %s0, 128, %s20, [#allocation3]
    $region5: #{tpu_custom_call.1} parent=1 // pred_fallthru
      _
    // Predicated region
    $region6: #{tpu_custom_call.1} parent=1 // pred_check
      _
    $region7: #{tpu_custom_call.1} parent=1 // pred_check_branch
      %24 = sbr.rel (0) target = $region9
    $region8: #{tpu_custom_call.1} parent=1 // pred_region
      %s26 = ssub.s32 2048, 2048
      %27 = vsyncadd [#allocation6], %s26
      %s28 = sshll.u32 [#allocation5], 4
      %s29 = int_to_ptr.vmem [resolvable:$true] %s28
      %34 = dma.hbm_to_vmem [thread:$0]  %s1, 2048, %s29, [#allocation6], 128, 128, 8
    $region9: #{tpu_custom_call.1} parent=1 // pred_fallthru
      _
    // Predicated region
    $region10: #{tpu_custom_call.1} parent=1 // pred_check
      _
    $region11: #{tpu_custom_call.1} parent=1 // pred_check_branch
      %36 = sbr.rel (0) target = $region13
    $region12: #{tpu_custom_call.1} parent=1 // pred_region
      %s38 = ssub.s32 128, 128
      %39 = vsyncadd [#allocation6], %s38
      %s41 = sshll.u32 [#allocation7], 4
      %s42 = int_to_ptr.vmem [resolvable:$true] %s41
      %44 = dma.hbm_to_vmem [thread:$0]  %s2, 128, %s42, [#allocation6]
    $region13: #{tpu_custom_call.1} parent=1 // pred_fallthru
      _
    // Predicated region
    $region14: #{tpu_custom_call.1} parent=1 // pred_check
      _
    $region15: #{tpu_custom_call.1} parent=1 // pred_check_branch
      %46 = sbr.rel (0) target = $region17
    $region16: #{tpu_custom_call.1} parent=1 // pred_region
      _
    $region17: #{tpu_custom_call.1} parent=1 // pred_fallthru
      _
    // Predicated region
    $region18: #{tpu_custom_call.1} parent=1 // pred_check
      _
    $region19: #{tpu_custom_call.1} parent=1 // pred_check_branch
      %48 = sbr.rel (0) target = $region21
    $region20: #{tpu_custom_call.1} parent=1 // pred_region
      _
    $region21: #{tpu_custom_call.1} parent=1 // pred_fallthru
      _
    // Predicated region
    $region22: #{tpu_custom_call.1} parent=1 // pred_check
      _
    $region23: #{tpu_custom_call.1} parent=1 // pred_check_branch
      %50 = sbr.rel (0) target = $region25
    $region24: #{tpu_custom_call.1} parent=1 // pred_region
      %51 = dma.done [#allocation3], 128
    $region25: #{tpu_custom_call.1} parent=1 // pred_fallthru
      _
    // Predicated region
    $region26: #{tpu_custom_call.1} parent=1 // pred_check
      _
    $region27: #{tpu_custom_call.1} parent=1 // pred_check_branch
      %53 = sbr.rel (0) target = $region29
    $region28: #{tpu_custom_call.1} parent=1 // pred_region
      %54 = dma.done [#allocation6], 2048
    $region29: #{tpu_custom_call.1} parent=1 // pred_fallthru
      _
    // Predicated region
    $region30: #{tpu_custom_call.1} parent=1 // pred_check
      _
    $region31: #{tpu_custom_call.1} parent=1 // pred_check_branch
      %56 = sbr.rel (0) target = $region33
    $region32: #{tpu_custom_call.1} parent=1 // pred_region
      %57 = dma.done [#allocation6], 128
    $region33: #{tpu_custom_call.1} parent=1 // pred_fallthru
      _
    %v58 = vld [vmem:[#allocation2] sm:$0xff]
    %v59 = vld [vmem:[#allocation5] sm:$0xff]
    %v60 = vld [vmem:[#allocation5 + $0x8] sm:$0xff]
    %v61 = vld [vmem:[#allocation5 + $0x10] sm:$0xff]
    %v62 = vld [vmem:[#allocation5 + $0x18] sm:$0xff]
    %v63 = vld [vmem:[#allocation5 + $0x20] sm:$0xff]
    %v64 = vld [vmem:[#allocation5 + $0x28] sm:$0xff]
    %v65 = vld [vmem:[#allocation5 + $0x30] sm:$0xff]
    %v66 = vld [vmem:[#allocation5 + $0x38] sm:$0xff]
    %v67 = vld [vmem:[#allocation5 + $0x40] sm:$0xff]
    %v68 = vld [vmem:[#allocation5 + $0x48] sm:$0xff]
    %v69 = vld [vmem:[#allocation5 + $0x50] sm:$0xff]
    %v70 = vld [vmem:[#allocation5 + $0x58] sm:$0xff]
    %v71 = vld [vmem:[#allocation5 + $0x60] sm:$0xff]
    %v72 = vld [vmem:[#allocation5 + $0x68] sm:$0xff]
    %v73 = vld [vmem:[#allocation5 + $0x70] sm:$0xff]
    %v74 = vld [vmem:[#allocation5 + $0x78] sm:$0xff]
    %v75 = vld [vmem:[#allocation7] sm:$0xff]
    %76 = vmatprep.subr.mxu0 0.0
    %77 = vmatpush1.msra.mxu0 %v59
    %78 = vmatprep.subr.mxu0 0.0
    %79 = vmatpush1.msra.mxu0 %v60
    %80 = vmatprep.subr.mxu0 0.0
    %81 = vmatpush1.msra.mxu0 %v61
    %82 = vmatprep.subr.mxu0 0.0
    %83 = vmatpush1.msra.mxu0 %v62
    %84 = vmatprep.subr.mxu0 0.0
    %85 = vmatpush1.msra.mxu0 %v63
    %86 = vmatprep.subr.mxu0 0.0
    %87 = vmatpush1.msra.mxu0 %v64
    %88 = vmatprep.subr.mxu0 0.0
    %89 = vmatpush1.msra.mxu0 %v65
    %90 = vmatprep.subr.mxu0 0.0
    %91 = vmatpush1.msra.mxu0 %v66
    %92 = vmatprep.subr.mxu0 0.0
    %93 = vmatpush1.msra.mxu0 %v67
    %94 = vmatprep.subr.mxu0 0.0
    %95 = vmatpush1.msra.mxu0 %v68
    %96 = vmatprep.subr.mxu0 0.0
    %97 = vmatpush1.msra.mxu0 %v69
    %98 = vmatprep.subr.mxu0 0.0
    %99 = vmatpush1.msra.mxu0 %v70
    %100 = vmatprep.subr.mxu0 0.0
    %101 = vmatpush1.msra.mxu0 %v71
    %102 = vmatprep.subr.mxu0 0.0
    %103 = vmatpush1.msra.mxu0 %v72
    %104 = vmatprep.subr.mxu0 0.0
    %105 = vmatpush1.msra.mxu0 %v73
    %106 = vmatprep.subr.mxu0 0.0
    %107 = vmatpush1.msra.mxu0 %v74
    %108 = vmatprep.subr.mxu0 0.0
    %109 = vmatpush1.msra.mxu0 0.0
    %110 = vmatprep.subr.mxu0 0.0
    %111 = vmatpush1.msra.mxu0 0.0
    %112 = vmatprep.subr.mxu0 0.0
    %113 = vmatpush1.msra.mxu0 0.0
    %114 = vmatprep.subr.mxu0 0.0
    %115 = vmatpush1.msra.mxu0 0.0
    %116 = vmatprep.subr.mxu0 0.0
    %117 = vmatpush1.msra.mxu0 0.0
    %118 = vmatprep.subr.mxu0 0.0
    %119 = vmatpush1.msra.mxu0 0.0
    %120 = vmatprep.subr.mxu0 0.0
    %121 = vmatpush1.msra.mxu0 0.0
    %122 = vmatprep.subr.mxu0 0.0
    %123 = vmatpush1.msra.mxu0 0.0
    %124 = vmatprep.subr.mxu0 0.0
    %125 = vmatpush1.msra.mxu0 0.0
    %126 = vmatprep.subr.mxu0 0.0
    %127 = vmatpush1.msra.mxu0 0.0
    %128 = vmatprep.subr.mxu0 0.0
    %129 = vmatpush1.msra.mxu0 0.0
    %130 = vmatprep.subr.mxu0 0.0
    %131 = vmatpush1.msra.mxu0 0.0
    %132 = vmatprep.subr.mxu0 0.0
    %133 = vmatpush1.msra.mxu0 0.0
    %134 = vmatprep.subr.mxu0 0.0
    %135 = vmatpush1.msra.mxu0 0.0
    %136 = vmatprep.subr.mxu0 0.0
    %137 = vmatpush1.msra.mxu0 0.0
    %138 = vmatprep.subr.mxu0 0.0
    %139 = vmatpush1.msra.mxu0 0.0
    %140 = vmatprep.mubr.f32.mxu0 0.0
    %141 = vmatmul.mubr.f32.gmra.mrb[0].mxu0 %v58
    %v142 = vpop.f32.mrb[0].mxu0
    %v143 = vadd.f32 %v75, %v142
    %v144 = vpop.f32.mrb[0].mxu0
    %145 = vdwg.mxu0
    %v146 = vtanh.pop %v143
    %v147 = vld [vmem:[%s3] sm:$0x1]
    %v149 = vlaneseq
    %v150 = vshrl.u32 %v149, 7
    %v151 = vsub.s32 0, %v150
    %v152 = vrot.slane %v147, %v151
    %v154 = vmul.f32 %v152, %v146
    %v155 = vld [vmem:[%s4] sm:$0x1]
    %v157 = vlaneseq
    %v158 = vshrl.u32 %v157, 7
    %v159 = vsub.s32 0, %v158
    %v160 = vrot.slane %v155, %v159
    %v162 = vmul.f32 %v160, %v58
    %v163 = vsub.f32 %v154, %v162
    %164 = vst [vmem:[#allocation8] sm:$0xff] %v163
    // Predicated region
    $region34: #{tpu_custom_call.1} parent=1 // pred_check
      _
    $region35: #{tpu_custom_call.1} parent=1 // pred_check_branch
      %166 = sbr.rel (0) target = $region37
    $region36: #{tpu_custom_call.1} parent=1 // pred_region
      %s168 = ssub.s32 128, 128
      %169 = vsyncadd [#allocation4], %s168
      %s171 = sshll.u32 [#allocation8], 4
      %s172 = int_to_ptr.vmem [resolvable:$true] %s171
      %174 = dma.vmem_to_hbm [thread:$0]  %s172, 128, %s5, [#allocation4]
    $region37: #{tpu_custom_call.1} parent=1 // pred_fallthru
      _
    // Predicated region
    $region38: #{tpu_custom_call.1} parent=1 // pred_check
      _
    $region39: #{tpu_custom_call.1} parent=1 // pred_check_branch
      %176 = sbr.rel (0) target = $region41
    $region40: #{tpu_custom_call.1} parent=1 // pred_region
      %177 = dma.done [#allocation4], 128
    $region41: #{tpu_custom_call.1} parent=1 // pred_fallthru
      _
    %178 = vsyncpa [#allocation3], 1
    %179 = vsyncpa [#allocation6], 1
    %180 = vsyncpa [#allocation4], 1

</llo_original>
